<compile_context>
chip_gen: v7x
topology: tpu7x:2x2x1
jax: 0.10.0
libtpu: 0.0.40
codegen_flags: <defaults>
</compile_context>

<pallas_src>
import jax
import jax.numpy as jnp
from jax.experimental import pallas as pl
from jax.experimental.pallas import tpu as pltpu


def pam_kernel(b_ref, w_ref, x_ref, o_ref):
    # b_ref: SMEM (1,)      conv bias
    # w_ref: VMEM (1, C)    conv weight (1x1 conv == per-channel scalar)
    # x_ref: VMEM (C, T)    one spatial tile of one batch element
    # o_ref: VMEM (C, T)
    x = x_ref[...]                                        # (C, T)
    w = w_ref[...]                                        # (1, C)
    # 1x1 conv (C -> 1): channel reduction as a tiny MXU matmul.
    s = jnp.dot(w, x, preferred_element_type=jnp.float32) + b_ref[0]   # (1, T)
    y = jax.nn.sigmoid(s)                                 # (1, T)
    # x * y.repeat(channel) + x  ==  x * (1 + y), broadcast over channel axis.
    o_ref[...] = x * (1.0 + y)


def pam_forward(x_nchw, weight, bias, *, target_block_bytes=1 << 20):
    """x_nchw: (N, C, H, W) float32; weight: (C,) float32; bias: scalar float32."""
    N, C, H, W = x_nchw.shape
    HW = H * W

    # Lane-dense spatial tile: multiple of 128, ~target_block_bytes per block.
    t_max = max(128, (target_block_bytes // (C * 4)) // 128 * 128)
    hw_128 = pl.cdiv(HW, 128) * 128
    T = min(t_max, hw_128)
    HW_pad = pl.cdiv(HW, T) * T

    x = x_nchw.reshape(N, C, HW).astype(jnp.float32)
    if HW_pad != HW:
        # Zero-padded tail: sigmoid(b) * 0 == 0, harmless; sliced off below.
        x = jnp.pad(x, ((0, 0), (0, 0), (0, HW_pad - HW)))

    w = weight.reshape(1, C).astype(jnp.float32)
    b = jnp.asarray(bias, jnp.float32).reshape(1)

    grid = (N, HW_pad // T)

    out = pl.pallas_call(
        pam_kernel,
        out_shape=jax.ShapeDtypeStruct((N, C, HW_pad), jnp.float32),
        grid_spec=pltpu.PrefetchScalarGridSpec(
            num_scalar_prefetch=0,
            grid=grid,
            in_specs=[
                pl.BlockSpec(memory_space=pltpu.SMEM),                # bias (1,)
                pl.BlockSpec((1, C), lambda n, t: (0, 0)),            # weight (resident)
                pl.BlockSpec((pl.Squeezed(), C, T), lambda n, t: (n, 0, t)),
            ],
            out_specs=pl.BlockSpec((pl.Squeezed(), C, T), lambda n, t: (n, 0, t)),
        ),
        compiler_params=pltpu.CompilerParams(
            dimension_semantics=("parallel", "parallel"),
        ),
    )(b, w, x)

    if HW_pad != HW:
        out = out[:, :, :HW]
    return out.reshape(N, C, H, W)


def pam_reference(x_nchw, weight, bias):
    # Pure-JAX reference for correctness check (mirrors the PyTorch forward).
    s = jnp.einsum("nchw,c->nhw", x_nchw, weight) + bias        # 1x1 conv, C->1
    y = jax.nn.sigmoid(s)[:, None, :, :]                        # (N,1,H,W)
    return x_nchw * y + x_nchw


if __name__ == "__main__":
    key = jax.random.PRNGKey(0)
    kx, kw, kb = jax.random.split(key, 3)

    N, C, H, W = 2, 4, 16, 16
    x = jax.random.normal(kx, (N, C, H, W), dtype=jnp.float32)

    # Deterministic synthetic Conv2d(C, 1, kernel_size=1) parameters.
    weight = jax.random.normal(kw, (C,), dtype=jnp.float32) * 0.1
    bias = jax.random.normal(kb, (), dtype=jnp.float32) * 0.1

    out = pam_forward(x, weight, bias)
    out = jax.block_until_ready(out)

    ref = pam_reference(x, weight, bias)
    assert out.shape == (N, C, H, W)
    assert jnp.allclose(out, ref, atol=1e-5, rtol=1e-5), "mismatch vs reference"

    print("KERNEL_OK")
</pallas_src>

<mosaic_0001>
module attributes {stable_mosaic.version = 11 : i64} {
  func.func @pam_kernel(%arg0: i32, %arg1: i32, %arg2: memref<1xf32, #tpu.memory_space<smem>>, %arg3: memref<1x4xf32, #tpu.memory_space<vmem>>, %arg4: memref<1x4x256xf32, #tpu.memory_space<vmem>>, %arg5: memref<1x4x256xf32, #tpu.memory_space<vmem>>) attributes {dimension_semantics = [#tpu.dimension_semantics<parallel>, #tpu.dimension_semantics<parallel>], iteration_bounds = array<i64: 2, 1>, scalar_prefetch = 0 : i64, scratch_operands = 0 : i64, tpu.core_type = #tpu.core_type<tc>, window_params = [{transform_indices = @transform_0, window_bounds = array<i64: 1>}, {pipeline_mode = #tpu.pipeline_mode<synchronous>, transform_indices = @transform_1, window_bounds = array<i64: 1, 4>}, {transform_indices = @transform_2, window_bounds = array<i64: 1, 4, 256>}, {transform_indices = @transform_3, window_bounds = array<i64: 1, 4, 256>}]} {
    %c0 = arith.constant 0 : index
    %c0_0 = arith.constant 0 : index
    %c0_1 = arith.constant 0 : index
    %0 = vector.load %arg4[%c0, %c0_0, %c0_1] : memref<1x4x256xf32, #tpu.memory_space<vmem>>, vector<1x4x256xf32>
    %1 = vector.shape_cast %0 : vector<1x4x256xf32> to vector<4x256xf32>
    %c0_2 = arith.constant 0 : index
    %c0_3 = arith.constant 0 : index
    %2 = vector.load %arg3[%c0_2, %c0_3] : memref<1x4xf32, #tpu.memory_space<vmem>>, vector<1x4xf32>
    %cst = arith.constant dense<0.000000e+00> : vector<1x256xf32>
    %3 = tpu.matmul %2, %1, %cst {dimension_numbers = #tpu.dot_dimension_numbers<[1], [0], [0], [1], [0, 0, 1, 1], [], []>} : vector<1x4xf32>, vector<4x256xf32>, vector<1x256xf32> -> vector<1x256xf32>
    %c0_4 = arith.constant 0 : index
    %4 = memref.load %arg2[%c0_4] : memref<1xf32, #tpu.memory_space<smem>>
    %5 = vector.broadcast %4 : f32 to vector<1x256xf32>
    %6 = arith.addf %3, %5 : vector<1x256xf32>
    %7 = arith.negf %6 : vector<1x256xf32>
    %8 = math.exp %7 : vector<1x256xf32>
    %cst_5 = arith.constant 1.000000e+00 : f32
    %9 = vector.broadcast %cst_5 : f32 to vector<1x256xf32>
    %10 = arith.addf %9, %8 : vector<1x256xf32>
    %11 = arith.divf %9, %10 : vector<1x256xf32>
    %cst_6 = arith.constant 1.000000e+00 : f32
    %12 = vector.broadcast %cst_6 : f32 to vector<1x256xf32>
    %13 = arith.addf %12, %11 : vector<1x256xf32>
    %14 = vector.broadcast %13 : vector<1x256xf32> to vector<4x256xf32>
    %15 = arith.mulf %1, %14 : vector<4x256xf32>
    %c0_7 = arith.constant 0 : index
    %c0_8 = arith.constant 0 : index
    %c0_9 = arith.constant 0 : index
    %16 = vector.load %arg5[%c0_7, %c0_8, %c0_9] : memref<1x4x256xf32, #tpu.memory_space<vmem>>, vector<1x4x256xf32>
    %17 = vector.shape_cast %16 : vector<1x4x256xf32> to vector<4x256xf32>
    %18 = vector.shape_cast %15 : vector<4x256xf32> to vector<1x4x256xf32>
    tpu.vector_store %arg5[%c0_7, %c0_8, %c0_9], %18 {strides = array<i32>} : memref<1x4x256xf32, #tpu.memory_space<vmem>>, vector<1x4x256xf32>,
    return
  }
  func.func @transform_0(%arg0: i32, %arg1: i32) -> i32 {
    %c0_i32 = arith.constant 0 : i32
    %c0_i32_0 = arith.constant 0 : i32
    return %c0_i32 : i32
  }
  func.func @transform_1(%arg0: i32, %arg1: i32) -> (i32, i32) {
    %c0_i32 = arith.constant 0 : i32
    %c0_i32_0 = arith.constant 0 : i32
    %c0_i32_1 = arith.constant 0 : i32
    return %c0_i32, %c0_i32_0 : i32, i32
  }
  func.func @transform_2(%arg0: i32, %arg1: i32) -> (i32, i32, i32) {
    %c0_i32 = arith.constant 0 : i32
    %c0_i32_0 = arith.constant 0 : i32
    return %arg0, %c0_i32, %arg1 : i32, i32, i32
  }
  func.func @transform_3(%arg0: i32, %arg1: i32) -> (i32, i32, i32) {
    %c0_i32 = arith.constant 0 : i32
    %c0_i32_0 = arith.constant 0 : i32
    return %arg0, %c0_i32, %arg1 : i32, i32, i32
  }
}

</mosaic_0001>

<llo_original>
// kernel: tpu_custom_call.1
$region0: #{tpu_custom_call.1}
  #allocation0 [shape = 'u32[]', space=smem, size = 0x4, offset = 0x4, fixed_abs, tag = 'smem constant byte address 0x4 - core index']
  #allocation1 [shape = 'u32[144,128]{1,0:T(1,128)}', space=vmem, size = 0x12000, scoped, tag = 'internal scratch']
  #allocation2 [shape = 'f32[1]{0:T(128)S(6)}', space=smem, size = 0x200, scoped, tag = 'scoped memory for tpu_custom_call.1']
  %s0 = inlined_call_operand.<no memory space> [shape: f32[1], index: 0, kind: input, shape index: {}]
  %s1 = inlined_call_operand.vmem [shape: f32[1,4], index: 1, kind: input, shape index: {}]
  %s2 = inlined_call_operand.hbm [shape: f32[2,4,256], index: 2, kind: input, shape index: {}]
  %s3 = inlined_call_operand.hbm [shape: f32[2,4,256], index: 3, kind: output, shape index: {}]
  %s4 = sld [smem:[#allocation0]]
  $region49: #{tpu_custom_call.1} parent=0
    _
  %s6 = ssub.s32 1, %s4
  %s7 = scalar_select 0, %s6, %s4
  %8 = sst [smem:[#allocation2]] %s0
  $region1: #{tpu_custom_call.1} parent=0
    #allocation3 [shape = 'u8[8192]{0}', space=vmem, size = 0x2000, scoped, tag = 'input window, operand 2']
    #allocation4 [shape = 's32[2]{0}', space=sflag, size = 0x8, scoped, tag = 'scoped memory for tpu_custom_call.1']
    #allocation5 [shape = 's32[2]{0}', space=sflag, size = 0x8, scoped, tag = 'scoped memory for tpu_custom_call.1']
    #allocation6 [shape = 'u8[8192]{0}', space=vmem, size = 0x2000, scoped, tag = 'output window, operand 0']
    %9 = vsyncpa [#allocation4], 0
    %s10 = scalar_lea.sflag [#allocation4], 1
    %11 = vsyncpa %s10, 0
    %12 = vsyncpa [#allocation5], 0
    %s13 = scalar_lea.sflag [#allocation5], 1
    %14 = vsyncpa %s13, 0
    loop: start=0, step=1, limit=4
    $region2: #{tpu_custom_call.1} parent=1 // loop_pre_header
      _
    $region3: #{tpu_custom_call.1} parent=1 // loop_header
      %s16 = sphi 0, %s20
      %p17 = scmp.ge.s32.totalorder %s16, 4
      %s23 = sphi 0, %s35
      %s24 = sphi 0, %s31
      %s25 = sphi 0, %s23
      %s26 = sphi 0, %s24
      %s27 = sphi 0, %s25
      %s28 = sphi 0, %s26
      %s36 = sphi 0, %s36
      %s38 = sphi 0, %s36
      %s39 = sphi 0, %s38
      %s53 = sphi 0, %s39
      %s57 = sphi 0, %s57
      %s59 = sphi 0, %s57
      %s60 = sphi 0, %s59
      %s74 = sphi 0, %s60
      %s82 = sphi 0, %s84
      %s85 = sphi 0, %s82
      %s86 = sphi 0, %s85
      %s102 = sphi 0, %s86
      %s110 = sphi 0, %s112
      %s113 = sphi 0, %s110
      %s114 = sphi 0, %s113
      %s130 = sphi 0, %s114
    $region4: #{tpu_custom_call.1} parent=1 // loop_header_branch
      %19 = sbr.rel (%p17) target = $region8
    $region5: #{tpu_custom_call.1} parent=1 // loop_body
      %s21 = ssub.s32 %s16, 1
      %s22 = ssub.s32 %s16, 2
      %s29 = sadd.s32 1, %s24
      %p30 = scmp.ge.s32.totalorder %s29, 1
      %s31 = scalar_select %p30, 0, %s29
      %s32 = sadd.s32 1, %s23
      %s33 = scalar_select %p30, %s32, %s23
      %p34 = scmp.ge.s32.totalorder %s33, 2
      %s35 = scalar_select %p34, 0, %s33
      %s37 = sadd.s32 %s36, 1
      %p40 = scmp.eq.s32.totalorder %s16, 1
      %p41 = scmp.ne.s32.totalorder %s36, %s38
      %p42 = scmp.eq.s32.totalorder %s16, 0
      %p43 = por %p41, %p42
      %p44 = scmp.ne.s32.totalorder %s36, %s38
      %p45 = scmp.eq.s32.totalorder %s21, 1
      %p46 = por %p44, %p45
      %p47 = scmp.ne.s32.totalorder %s38, %s39
      %p48 = scmp.eq.s32.totalorder %s21, 0
      %p49 = por %p47, %p48
      %p50 = scmp.ne.s32.totalorder %s38, %s39
      %p51 = scmp.eq.s32.totalorder %s22, 1
      %p52 = por %p50, %p51
      %p54 = scmp.ne.s32.totalorder %s39, %s53
      %p55 = scmp.eq.s32.totalorder %s22, 0
      %p56 = por %p54, %p55
      %s58 = sadd.s32 %s57, 1
      %p61 = scmp.eq.s32.totalorder %s16, 1
      %p62 = scmp.ne.s32.totalorder %s57, %s59
      %p63 = scmp.eq.s32.totalorder %s16, 0
      %p64 = por %p62, %p63
      %p65 = scmp.ne.s32.totalorder %s57, %s59
      %p66 = scmp.eq.s32.totalorder %s21, 1
      %p67 = por %p65, %p66
      %p68 = scmp.ne.s32.totalorder %s59, %s60
      %p69 = scmp.eq.s32.totalorder %s21, 0
      %p70 = por %p68, %p69
      %p71 = scmp.ne.s32.totalorder %s59, %s60
      %p72 = scmp.eq.s32.totalorder %s22, 1
      %p73 = por %p71, %p72
      %p75 = scmp.ne.s32.totalorder %s60, %s74
      %p76 = scmp.eq.s32.totalorder %s22, 0
      %p77 = por %p75, %p76
      %s78 = ssub.s32 %s23, %s35
      %s79 = ssub.s32 %s24, %s31
      %s80 = sor.u32 %s78, %s79
      %p81 = scmp.eq.s32.totalorder %s80, 0
      %s83 = sadd.s32 %s82, 1
      %s84 = scalar_select %p81, %s82, %s83
      %p87 = pneg %p81
      %p88 = scmp.eq.s32.totalorder %s16, 1
      %p89 = por %p87, %p88
      %p90 = scmp.ne.s32.totalorder %s82, %s85
      %p91 = scmp.eq.s32.totalorder %s16, 0
      %p92 = por %p90, %p91
      %p93 = scmp.ne.s32.totalorder %s82, %s85
      %p94 = scmp.eq.s32.totalorder %s21, 1
      %p95 = por %p93, %p94
      %p96 = scmp.ne.s32.totalorder %s85, %s86
      %p97 = scmp.eq.s32.totalorder %s21, 0
      %p98 = por %p96, %p97
      %p99 = scmp.ne.s32.totalorder %s85, %s86
      %p100 = scmp.eq.s32.totalorder %s22, 1
      %p101 = por %p99, %p100
      %p103 = scmp.ne.s32.totalorder %s86, %s102
      %p104 = scmp.eq.s32.totalorder %s22, 0
      %p105 = por %p103, %p104
      %s106 = ssub.s32 %s23, %s35
      %s107 = ssub.s32 %s24, %s31
      %s108 = sor.u32 %s106, %s107
      %p109 = scmp.eq.s32.totalorder %s108, 0
      %s111 = sadd.s32 %s110, 1
      %s112 = scalar_select %p109, %s110, %s111
      %p115 = pneg %p109
      %p116 = scmp.eq.s32.totalorder %s16, 1
      %p117 = por %p115, %p116
      %p118 = scmp.ne.s32.totalorder %s110, %s113
      %p119 = scmp.eq.s32.totalorder %s16, 0
      %p120 = por %p118, %p119
      %p121 = scmp.ne.s32.totalorder %s110, %s113
      %p122 = scmp.eq.s32.totalorder %s21, 1
      %p123 = por %p121, %p122
      %p124 = scmp.ne.s32.totalorder %s113, %s114
      %p125 = scmp.eq.s32.totalorder %s21, 0
      %p126 = por %p124, %p125
      %p127 = scmp.ne.s32.totalorder %s113, %s114
      %p128 = scmp.eq.s32.totalorder %s22, 1
      %p129 = por %p127, %p128
      %p131 = scmp.ne.s32.totalorder %s114, %s130
      %p132 = scmp.eq.s32.totalorder %s22, 0
      %p133 = por %p131, %p132
      %p134 = scmp.le.s32.totalorder 1, %s16
      %p135 = scmp.lt.s32.totalorder %s16, 3
      %p136 = pnand %p134, %p135
      %p137 = pneg %p136
      // Predicated region
      $region9: #{tpu_custom_call.1} parent=5 // pred_check
        _
      $region10: #{tpu_custom_call.1} parent=5 // pred_check_branch
        %139 = sbr.rel (%p136) target = $region12
      $region11: #{tpu_custom_call.1} parent=5 // pred_region
        %s140 = ssub.s32 %s16, 1
        // Predicated region
        $region13: #{tpu_custom_call.1} parent=11 // pred_check
          %p141 = pneg %p49
        $region14: #{tpu_custom_call.1} parent=11 // pred_check_branch
          %143 = sbr.rel (%p141) target = $region16
        $region15: #{tpu_custom_call.1} parent=11 // pred_region
          _
        $region16: #{tpu_custom_call.1} parent=11 // pred_fallthru
          _
        // Predicated region
        $region17: #{tpu_custom_call.1} parent=11 // pred_check
          %p144 = pneg %p70
        $region18: #{tpu_custom_call.1} parent=11 // pred_check_branch
          %146 = sbr.rel (%p144) target = $region20
        $region19: #{tpu_custom_call.1} parent=11 // pred_region
          _
        $region20: #{tpu_custom_call.1} parent=11 // pred_fallthru
          _
      $region12: #{tpu_custom_call.1} parent=5 // pred_fallthru
        _
      %p147 = scmp.lt.s32.totalorder %s16, 2
      // Predicated region
      $region21: #{tpu_custom_call.1} parent=5 // pred_check
        %p148 = pneg %p147
      $region22: #{tpu_custom_call.1} parent=5 // pred_check_branch
        %150 = sbr.rel (%p148) target = $region24
      $region23: #{tpu_custom_call.1} parent=5 // pred_region
        // Predicated region
        $region25: #{tpu_custom_call.1} parent=23 // pred_check
          %p151 = pneg %p92
        $region26: #{tpu_custom_call.1} parent=23 // pred_check_branch
          %153 = sbr.rel (%p151) target = $region28
        $region27: #{tpu_custom_call.1} parent=23 // pred_region
          %s154 = sand.u32 %s82, 1
          %s155 = scalar_lea.sflag [#allocation4], %s154
          %s156 = sand.u32 %s82, 1
          %s157 = smul.addr %s156, 8
          %s158 = scalar_lea.vmem [#allocation3], %s157
          %s159 = smul.u32 2, %s24
          %s161 = ssub.s32 128, 128
          %162 = vsyncadd %s155, %s161
          %s163 = smul.addr %s23, 2
          %s164 = sadd.s32 %s159, %s163
          %s165 = smul.addr %s164, 64
          %s166 = scalar_lea.hbm %s2, %s165
          %s168 = sshll.u32 %s158, 4
          %s169 = int_to_ptr.vmem [resolvable:$true] %s168
          %171 = dma.hbm_to_vmem [thread:$0]  %s166, 128, %s169, %s155
        $region28: #{tpu_custom_call.1} parent=23 // pred_fallthru
          _
      $region24: #{tpu_custom_call.1} parent=5 // pred_fallthru
        _
      %p172 = scmp.le.s32.totalorder 1, %s16
      %p173 = scmp.lt.s32.totalorder %s16, 3
      %p174 = pnand %p172, %p173
      %p175 = pneg %p174
      // Predicated region
      $region29: #{tpu_custom_call.1} parent=5 // pred_check
        _
      $region30: #{tpu_custom_call.1} parent=5 // pred_check_branch
        %177 = sbr.rel (%p174) target = $region32
      $region31: #{tpu_custom_call.1} parent=5 // pred_region
        %s178 = ssub.s32 %s16, 1
        %s179 = sand.u32 %s85, 1
        %s180 = scalar_lea.sflag [#allocation4], %s179
        %s181 = sand.u32 %s85, 1
        %s182 = smul.addr %s181, 8
        %s183 = scalar_lea.vmem [#allocation3], %s182
        // Predicated region
        $region33: #{tpu_custom_call.1} parent=31 // pred_check
          %p184 = pneg %p98
        $region34: #{tpu_custom_call.1} parent=31 // pred_check_branch
          %186 = sbr.rel (%p184) target = $region36
        $region35: #{tpu_custom_call.1} parent=31 // pred_region
          %187 = dma.done %s180, 128
        $region36: #{tpu_custom_call.1} parent=31 // pred_fallthru
          _
        %p188 = pneg %p49
        %p189 = pneg %p46
        %p190 = pneg %p70
        %p191 = pneg %p67
        %s192 = sand.u32 %s85, 1
        %s193 = scalar_lea.sflag [#allocation4], %s192
        %s194 = sand.u32 %s85, 1
        %s195 = smul.addr %s194, 8
        %s196 = scalar_lea.vmem [#allocation3], %s195
        %p197 = pneg %p98
        %p198 = pneg %p95
        %p199 = pneg %p126
        %p200 = pneg %p123
        %s201 = sand.u32 %s113, 1
        %s202 = scalar_lea.sflag [#allocation5], %s201
        %s203 = sand.u32 %s113, 1
        %s204 = smul.addr %s203, 8
        %s205 = scalar_lea.vmem [#allocation6], %s204
        %s206 = smul.u32 2, %s26
        %s207 = smul.u32 2, %s26
        %v208 = vld [vmem:[%s183] sm:$0xff]
        %v209 = vld [vmem:[%s1] sm:$0x1]
        %s210 = sld [smem:[#allocation2]]
        %v211 = vstv %s210
        %v213 = vcombine.high %v208, %v208
        %vm214 = vcmask 31744
        %v216 = vsel %vm214, %v209, 0
        %vm218 = vcmask 1043456
        %v219 = vsel %vm218, %v208, 0
        %v221 = vsel %vm218, %v213, 0
        %223 = vmatprep.subr.mxu0 %v221
        %224 = vmatpush1.msra.mxu0 %v219
        %225 = vmatprep.subr.mxu0 0.0
        %226 = vmatpush1.msra.mxu0 0.0
        %227 = vmatprep.subr.mxu0 0.0
        %228 = vmatpush1.msra.mxu0 0.0
        %229 = vmatprep.subr.mxu0 0.0
        %230 = vmatpush1.msra.mxu0 0.0
        %231 = vmatprep.subr.mxu0 0.0
        %232 = vmatpush1.msra.mxu0 0.0
        %233 = vmatprep.subr.mxu0 0.0
        %234 = vmatpush1.msra.mxu0 0.0
        %235 = vmatprep.subr.mxu0 0.0
        %236 = vmatpush1.msra.mxu0 0.0
        %237 = vmatprep.subr.mxu0 0.0
        %238 = vmatpush1.msra.mxu0 0.0
        %239 = vmatprep.subr.mxu0 0.0
        %240 = vmatpush1.msra.mxu0 0.0
        %241 = vmatprep.subr.mxu0 0.0
        %242 = vmatpush1.msra.mxu0 0.0
        %243 = vmatprep.subr.mxu0 0.0
        %244 = vmatpush1.msra.mxu0 0.0
        %245 = vmatprep.subr.mxu0 0.0
        %246 = vmatpush1.msra.mxu0 0.0
        %247 = vmatprep.subr.mxu0 0.0
        %248 = vmatpush1.msra.mxu0 0.0
        %249 = vmatprep.subr.mxu0 0.0
        %250 = vmatpush1.msra.mxu0 0.0
        %251 = vmatprep.subr.mxu0 0.0
        %252 = vmatpush1.msra.mxu0 0.0
        %253 = vmatprep.subr.mxu0 0.0
        %254 = vmatpush1.msra.mxu0 0.0
        %255 = vmatprep.subr.mxu0 0.0
        %256 = vmatpush1.msra.mxu0 0.0
        %257 = vmatprep.subr.mxu0 0.0
        %258 = vmatpush1.msra.mxu0 0.0
        %259 = vmatprep.subr.mxu0 0.0
        %260 = vmatpush1.msra.mxu0 0.0
        %261 = vmatprep.subr.mxu0 0.0
        %262 = vmatpush1.msra.mxu0 0.0
        %263 = vmatprep.subr.mxu0 0.0
        %264 = vmatpush1.msra.mxu0 0.0
        %265 = vmatprep.subr.mxu0 0.0
        %266 = vmatpush1.msra.mxu0 0.0
        %267 = vmatprep.subr.mxu0 0.0
        %268 = vmatpush1.msra.mxu0 0.0
        %269 = vmatprep.subr.mxu0 0.0
        %270 = vmatpush1.msra.mxu0 0.0
        %271 = vmatprep.subr.mxu0 0.0
        %272 = vmatpush1.msra.mxu0 0.0
        %273 = vmatprep.subr.mxu0 0.0
        %274 = vmatpush1.msra.mxu0 0.0
        %275 = vmatprep.subr.mxu0 0.0
        %276 = vmatpush1.msra.mxu0 0.0
        %277 = vmatprep.subr.mxu0 0.0
        %278 = vmatpush1.msra.mxu0 0.0
        %279 = vmatprep.subr.mxu0 0.0
        %280 = vmatpush1.msra.mxu0 0.0
        %281 = vmatprep.subr.mxu0 0.0
        %282 = vmatpush1.msra.mxu0 0.0
        %283 = vmatprep.subr.mxu0 0.0
        %284 = vmatpush1.msra.mxu0 0.0
        %285 = vmatprep.subr.mxu0 0.0
        %286 = vmatpush1.msra.mxu0 0.0
        %287 = vmatprep.mubr.f32.mxu0 0.0
        %288 = vmatmul.mubr.f32.gmra.mrb[0].mxu0 %v216
        %v289 = vpop.f32.mrb[0].mxu0
        %v290 = vadd.f32 %v211, %v289
        %v291 = vpop.f32.mrb[0].mxu0
        %v292 = vadd.f32 %v211, %v291
        %293 = vdwg.mxu0
        %v294 = vxor.u32 %v290, 2147483648
        %v295 = vxor.u32 %v292, 2147483648
        %v296 = vmul.f32 %v294, 1.442695
        %v297 = vpow.pop %v296
        %v298 = vmul.f32 %v295, 1.442695
        %v299 = vpow.pop %v298
        %v300 = vadd.f32 %v297, 1.0
        %v301 = vadd.f32 %v299, 1.0
        %v302 = vrcp.pop %v300
        %v303 = vmul.f32 1.0, %v302
        %v304 = vrcp.pop %v301
        %v305 = vmul.f32 1.0, %v304
        %v306 = vadd.f32 %v303, 1.0
        %v307 = vadd.f32 %v305, 1.0
        %v308 = vlaneseq
        %v309 = vshrl.u32 %v308, 7
        %v310 = vsub.s32 0, %v309
        %v311 = vrot.slane %v306, %v310
        %v312 = vlaneseq
        %v313 = vshrl.u32 %v312, 7
        %v314 = vsub.s32 0, %v313
        %v315 = vrot.slane %v307, %v314
        %v318 = vcombine.low %v311, %v315
        %v320 = vmul.f32 %v208, %v318
        %321 = vst [vmem:[%s205] sm:$0xff] %v320
        %s322 = sand.u32 %s113, 1
        %s323 = scalar_lea.sflag [#allocation5], %s322
        %s324 = sand.u32 %s113, 1
        %s325 = smul.addr %s324, 8
        %s326 = scalar_lea.vmem [#allocation6], %s325
        // Predicated region
        $region37: #{tpu_custom_call.1} parent=31 // pred_check
          %p327 = pneg %p123
        $region38: #{tpu_custom_call.1} parent=31 // pred_check_branch
          %329 = sbr.rel (%p327) target = $region40
        $region39: #{tpu_custom_call.1} parent=31 // pred_region
          %s330 = smul.u32 2, %s26
          %s332 = ssub.s32 128, 128
          %333 = vsyncadd %s323, %s332
          %s334 = smul.addr %s25, 2
          %s335 = sadd.s32 %s330, %s334
          %s336 = smul.addr %s335, 64
          %s337 = scalar_lea.hbm %s3, %s336
          %s339 = sshll.u32 %s326, 4
          %s340 = int_to_ptr.vmem [resolvable:$true] %s339
          %342 = dma.vmem_to_hbm [thread:$0]  %s340, 128, %s337, %s323
        $region40: #{tpu_custom_call.1} parent=31 // pred_fallthru
          _
      $region32: #{tpu_custom_call.1} parent=5 // pred_fallthru
        _
      %p343 = scmp.le.s32.totalorder 2, %s16
      // Predicated region
      $region41: #{tpu_custom_call.1} parent=5 // pred_check
        %p344 = pneg %p343
      $region42: #{tpu_custom_call.1} parent=5 // pred_check_branch
        %346 = sbr.rel (%p344) target = $region44
      $region43: #{tpu_custom_call.1} parent=5 // pred_region
        %s347 = ssub.s32 %s16, 2
        // Predicated region
        $region45: #{tpu_custom_call.1} parent=43 // pred_check
          %p348 = pneg %p129
        $region46: #{tpu_custom_call.1} parent=43 // pred_check_branch
          %350 = sbr.rel (%p348) target = $region48
        $region47: #{tpu_custom_call.1} parent=43 // pred_region
          %s351 = sand.u32 %s114, 1
          %s352 = scalar_lea.sflag [#allocation5], %s351
          %s353 = sand.u32 %s114, 1
          %s354 = smul.addr %s353, 8
          %s355 = scalar_lea.vmem [#allocation6], %s354
          %356 = dma.done %s352, 128
        $region48: #{tpu_custom_call.1} parent=43 // pred_fallthru
          _
      $region44: #{tpu_custom_call.1} parent=5 // pred_fallthru
        _
    $region6: #{tpu_custom_call.1} parent=1 // loop_footer
      %s20 = sadd.s32 1, %s16
    $region7: #{tpu_custom_call.1} parent=1 // loop_footer_branch
      %15 = sbr.rel target = $region3
    $region8: #{tpu_custom_call.1} parent=1 // loop_exit
      _
    %357 = vsyncpa [#allocation4], 1
    %s358 = scalar_lea.sflag [#allocation4], 1
    %359 = vsyncpa %s358, 1
    %360 = vsyncpa [#allocation5], 1
    %s361 = scalar_lea.sflag [#allocation5], 1
    %362 = vsyncpa %s361, 1

</llo_original>
